<compile_context>
chip_gen: v7x
topology: tpu7x:2x2x1
jax: 0.10.0
libtpu: 0.0.40
codegen_flags: <defaults>
</compile_context>

<pallas_src>
import jax
import jax.numpy as jnp
from jax.experimental import pallas as pl
from jax.experimental.pallas import tpu as pltpu

_LANE = 128
_TM_MAX = 64 * 1024        # max lane-tile width (lanes)
_TCO_MAX = 512             # Cout tile: keeps MXU output dim near native width
_MIN_GRID_STEPS = 8        # enough grid steps for 2-TC sharding + pipelining
_TM_SPLIT_FLOOR = 1024     # don't fragment tiles below this just to add steps


# ---------------------------------------------------------------------------
# Kernels
# ---------------------------------------------------------------------------

def _conv_relu_1x1_mxu_kernel(x_ref, w_ref, b_ref, o_ref):
    # x_ref: (Cin, tm), w_ref: (tco, Cin), b_ref: (tco, 1), o_ref: (tco, tm)
    acc = jnp.dot(w_ref[...], x_ref[...], preferred_element_type=jnp.float32)
    acc = acc + b_ref[...].astype(jnp.float32)
    o_ref[...] = jnp.maximum(acc, 0.0).astype(o_ref.dtype)


def _conv_relu_1x1_vpu_kernel(x_ref, w_ref, b_ref, o_ref):
    # Small-channel path (Cin <= 8, Cout <= 16): a (Cout, Cin) x (Cin, tm) dot
    # with tiny Cin/Cout wastes >90% of MXU work to padding; unrolled VPU
    # multiply-adds keep it purely memory-bound.  Casts and the bias add are
    # hoisted out of the unrolled loop.
    x = x_ref[...].astype(jnp.float32)            # (Cin, tm)
    w = w_ref[...].astype(jnp.float32)            # (Cout, Cin)
    b = b_ref[...].astype(jnp.float32)            # (Cout, 1)
    cin = x.shape[0]
    acc = w[:, 0:1] * x[0:1, :]                   # (Cout, tm)
    for k in range(1, cin):
        acc = acc + w[:, k:k + 1] * x[k:k + 1, :]
    acc = acc + b
    o_ref[...] = jnp.maximum(acc, 0.0).astype(o_ref.dtype)


# ---------------------------------------------------------------------------
# Tiling
# ---------------------------------------------------------------------------

def _vmem_capacity_bytes():
    try:
        cap = getattr(pltpu.get_tpu_info(), "vmem_capacity_bytes", None)
        if cap:
            return int(cap)
    except Exception:
        pass
    return 64 * 1024 * 1024   # conservative (v7x-class) default


def _round_down_lane(v):
    return max(_LANE, (v // _LANE) * _LANE)


def _round_up_lane(v):
    return ((v + _LANE - 1) // _LANE) * _LANE


def _pick_tiles(N, Cin, Cout, M, in_item, out_item, w_item):
    """Choose (tm, tco, nco, vmem_limit_bytes)."""
    phys = _vmem_capacity_bytes()
    if phys >= 100 * 1024 * 1024:            # v5e / v6e class: 128 MiB physical
        vmem_limit = 96 * 1024 * 1024
        budget = 48 * 1024 * 1024
    else:                                     # v7x class: 64 MiB physical / TC
        vmem_limit = 32 * 1024 * 1024
        budget = 22 * 1024 * 1024

    # Cout tile (multiple of 8, or the full extent).
    tco = Cout if Cout <= _TCO_MAX else _TCO_MAX
    nco = pl.cdiv(Cout, tco)

    # Resident weight + bias.  Counted double-buffered (conservative: the
    # single-buffer request may not be honored on every jax version).
    wb_bytes = 2 * (tco * Cin + tco) * w_item

    # Per-lane live VMEM: double-buffered x tile + out tile, plus ~2 f32
    # (tco, tm) elementwise temporaries inside the kernel body.
    per_lane = 2 * (Cin * in_item + tco * out_item) + 2 * tco * 4

    avail = max(budget - wb_bytes, per_lane * _LANE)
    tm = _round_down_lane(min(_TM_MAX, avail // per_lane))

    # Guarantee enough grid steps for v7x 2-TC sharding and for the software
    # pipeline to overlap DMA with compute -- but never fragment small work.
    nm_needed = max(1, pl.cdiv(_MIN_GRID_STEPS, N * nco))
    tm_step_cap = max(_TM_SPLIT_FLOOR, _round_up_lane(pl.cdiv(M, nm_needed)))
    tm = min(tm, tm_step_cap)

    if tm >= M:
        tm = M            # single full-extent lane tile (always legal)
    return tm, tco, nco, vmem_limit


# ---------------------------------------------------------------------------
# pallas_call wrapper
# ---------------------------------------------------------------------------

def _launch(kernel, x_mat, w_mat, b_col, *, N, Cin, Cout, M, tm, tco,
            vmem_limit, out_dtype, single_buffer_wb):
    # Single-buffer the grid-constant weight / bias blocks when requested
    # (halves their VMEM footprint); built inside this function so a missing
    # pipeline_mode / Buffered API is caught by the caller's fallback.
    wb_kwargs = {"pipeline_mode": pl.Buffered(1)} if single_buffer_wb else {}

    grid = (N, pl.cdiv(Cout, tco), pl.cdiv(M, tm))

    in_item = jnp.dtype(x_mat.dtype).itemsize
    w_item = jnp.dtype(w_mat.dtype).itemsize
    cost = pl.CostEstimate(
        flops=2 * N * M * Cin * Cout,
        transcendentals=0,
        bytes_accessed=in_item * N * M * (Cin + Cout)
        + w_item * (Cout * Cin + Cout),
    )

    return pl.pallas_call(
        kernel,
        out_shape=jax.ShapeDtypeStruct((N, Cout, M), out_dtype),
        grid_spec=pltpu.PrefetchScalarGridSpec(
            num_scalar_prefetch=0,
            grid=grid,
            in_specs=[
                # x tile: (Cin, tm), lane-dense in the H*W axis.
                pl.BlockSpec((None, Cin, tm), lambda n, co, m: (n, 0, m)),
                # weight tile: (tco, Cin); constant along n and m.
                pl.BlockSpec((tco, Cin), lambda n, co, m: (co, 0), **wb_kwargs),
                # bias tile: (tco, 1).
                pl.BlockSpec((tco, 1), lambda n, co, m: (co, 0), **wb_kwargs),
            ],
            out_specs=pl.BlockSpec((None, tco, tm), lambda n, co, m: (n, co, m)),
        ),
        compiler_params=pltpu.CompilerParams(
            dimension_semantics=("parallel", "parallel", "parallel"),
            vmem_limit_bytes=vmem_limit,
        ),
        cost_estimate=cost,
    )(x_mat, w_mat, b_col)


def conv_relu_1x1(x_nchw, weight, bias):
    """ReLU(Conv2d(kernel=1, stride=1, padding=0)(x)).

    x_nchw: (N, Cin, H, W)
    weight: (Cout, Cin, 1, 1)   (PyTorch Conv2d layout)
    bias:   (Cout,)
    returns (N, Cout, H, W), same dtype as x.
    """
    N, Cin, H, W = x_nchw.shape
    Cout = weight.shape[0]
    M = H * W

    w_mat = weight.reshape(Cout, Cin)
    b_col = bias.reshape(Cout, 1)

    if M < _LANE:
        # Lane dim < 128 -> every store is a masked partial vst and the launch
        # overhead dominates; plain XLA is the right tool for tiny spatials.
        y = jnp.einsum("nchw,oc->nohw", x_nchw, w_mat,
                       preferred_element_type=jnp.float32)
        y = y + bias.reshape(1, Cout, 1, 1)
        return jnp.maximum(y, 0.0).astype(x_nchw.dtype)

    x_mat = x_nchw.reshape(N, Cin, M)           # free (contiguous) view
    in_item = jnp.dtype(x_nchw.dtype).itemsize
    tm, tco, nco, vmem_limit = _pick_tiles(
        N, Cin, Cout, M, in_item, in_item, jnp.dtype(weight.dtype).itemsize)

    small_channels = (Cin <= 8) and (Cout <= 16)
    kernel = _conv_relu_1x1_vpu_kernel if small_channels else _conv_relu_1x1_mxu_kernel

    kwargs = dict(N=N, Cin=Cin, Cout=Cout, M=M, tm=tm, tco=tco,
                  vmem_limit=vmem_limit, out_dtype=x_nchw.dtype)

    if nco == 1:
        # Weight/bias blocks never change across the grid -> single buffer.
        try:
            out = _launch(kernel, x_mat, w_mat, b_col,
                          single_buffer_wb=True, **kwargs)
        except Exception:
            # pipeline_mode / Buffered(1) unsupported on this jax version:
            # fall back to the default double-buffered specs.
            out = _launch(kernel, x_mat, w_mat, b_col,
                          single_buffer_wb=False, **kwargs)
    else:
        out = _launch(kernel, x_mat, w_mat, b_col,
                      single_buffer_wb=False, **kwargs)

    return out.reshape(N, Cout, H, W)            # free reshape back to NCHW


if __name__ == "__main__":
    key = jax.random.PRNGKey(0)
    k_x, k_w, k_b = jax.random.split(key, 3)

    Nb, Cin, Cout, Hs, Ws = 2, 4, 8, 16, 16
    x = jax.random.normal(k_x, (Nb, Cin, Hs, Ws), dtype=jnp.float32)
    # Deterministic synthetic params (nn.Conv2d(in_, out, 1) shapes).
    weight = jax.random.normal(k_w, (Cout, Cin, 1, 1), dtype=jnp.float32) * 0.1
    bias = jax.random.normal(k_b, (Cout,), dtype=jnp.float32) * 0.1

    out = conv_relu_1x1(x, weight, bias)
    jax.block_until_ready(out)

    # Reference check (plain JAX): relu(einsum + bias).
    ref = jnp.einsum("nchw,oc->nohw", x, weight.reshape(Cout, Cin))
    ref = jnp.maximum(ref + bias.reshape(1, Cout, 1, 1), 0.0)
    assert out.shape == (Nb, Cout, Hs, Ws)
    assert jnp.allclose(out, ref, atol=1e-5), "mismatch vs reference"

    print("KERNEL_OK")
</pallas_src>

<mosaic_0001>
module attributes {stable_mosaic.version = 11 : i64} {
  func.func @_conv_relu_1x1_vpu_kernel(%arg0: i32, %arg1: i32, %arg2: i32, %arg3: memref<1x4x256xf32, #tpu.memory_space<vmem>>, %arg4: memref<8x4xf32, #tpu.memory_space<vmem>>, %arg5: memref<8x1xf32, #tpu.memory_space<vmem>>, %arg6: memref<1x8x256xf32, #tpu.memory_space<vmem>>) attributes {dimension_semantics = [#tpu.dimension_semantics<parallel>, #tpu.dimension_semantics<parallel>, #tpu.dimension_semantics<parallel>], iteration_bounds = array<i64: 2, 1, 1>, scalar_prefetch = 0 : i64, scratch_operands = 0 : i64, tpu.core_type = #tpu.core_type<tc>, window_params = [{transform_indices = @transform_0, window_bounds = array<i64: 1, 4, 256>}, {pipeline_mode = #tpu.pipeline_mode<synchronous>, transform_indices = @transform_1, window_bounds = array<i64: 8, 4>}, {pipeline_mode = #tpu.pipeline_mode<synchronous>, transform_indices = @transform_2, window_bounds = array<i64: 8, 1>}, {transform_indices = @transform_3, window_bounds = array<i64: 1, 8, 256>}]} {
    %c0 = arith.constant 0 : index
    %c0_0 = arith.constant 0 : index
    %c0_1 = arith.constant 0 : index
    %0 = vector.load %arg3[%c0, %c0_0, %c0_1] : memref<1x4x256xf32, #tpu.memory_space<vmem>>, vector<1x4x256xf32>
    %1 = vector.shape_cast %0 : vector<1x4x256xf32> to vector<4x256xf32>
    %c0_2 = arith.constant 0 : index
    %c0_3 = arith.constant 0 : index
    %2 = vector.load %arg4[%c0_2, %c0_3] : memref<8x4xf32, #tpu.memory_space<vmem>>, vector<8x4xf32>
    %c0_4 = arith.constant 0 : index
    %c0_5 = arith.constant 0 : index
    %3 = vector.load %arg5[%c0_4, %c0_5] : memref<8x1xf32, #tpu.memory_space<vmem>>, vector<8x1xf32>
    %4 = vector.extract_strided_slice %2 {offsets = [0, 0], sizes = [8, 1], strides = [1, 1]} : vector<8x4xf32> to vector<8x1xf32>
    %5 = vector.extract_strided_slice %1 {offsets = [0, 0], sizes = [1, 256], strides = [1, 1]} : vector<4x256xf32> to vector<1x256xf32>
    %6 = vector.broadcast %4 : vector<8x1xf32> to vector<8x256xf32>
    %7 = vector.broadcast %5 : vector<1x256xf32> to vector<8x256xf32>
    %8 = arith.mulf %6, %7 : vector<8x256xf32>
    %9 = vector.extract_strided_slice %2 {offsets = [0, 1], sizes = [8, 1], strides = [1, 1]} : vector<8x4xf32> to vector<8x1xf32>
    %10 = vector.extract_strided_slice %1 {offsets = [1, 0], sizes = [1, 256], strides = [1, 1]} : vector<4x256xf32> to vector<1x256xf32>
    %11 = vector.broadcast %9 : vector<8x1xf32> to vector<8x256xf32>
    %12 = vector.broadcast %10 : vector<1x256xf32> to vector<8x256xf32>
    %13 = arith.mulf %11, %12 : vector<8x256xf32>
    %14 = arith.addf %8, %13 : vector<8x256xf32>
    %15 = vector.extract_strided_slice %2 {offsets = [0, 2], sizes = [8, 1], strides = [1, 1]} : vector<8x4xf32> to vector<8x1xf32>
    %16 = vector.extract_strided_slice %1 {offsets = [2, 0], sizes = [1, 256], strides = [1, 1]} : vector<4x256xf32> to vector<1x256xf32>
    %17 = vector.broadcast %15 : vector<8x1xf32> to vector<8x256xf32>
    %18 = vector.broadcast %16 : vector<1x256xf32> to vector<8x256xf32>
    %19 = arith.mulf %17, %18 : vector<8x256xf32>
    %20 = arith.addf %14, %19 : vector<8x256xf32>
    %21 = vector.extract_strided_slice %2 {offsets = [0, 3], sizes = [8, 1], strides = [1, 1]} : vector<8x4xf32> to vector<8x1xf32>
    %22 = vector.extract_strided_slice %1 {offsets = [3, 0], sizes = [1, 256], strides = [1, 1]} : vector<4x256xf32> to vector<1x256xf32>
    %23 = vector.broadcast %21 : vector<8x1xf32> to vector<8x256xf32>
    %24 = vector.broadcast %22 : vector<1x256xf32> to vector<8x256xf32>
    %25 = arith.mulf %23, %24 : vector<8x256xf32>
    %26 = arith.addf %20, %25 : vector<8x256xf32>
    %27 = vector.broadcast %3 : vector<8x1xf32> to vector<8x256xf32>
    %28 = arith.addf %26, %27 : vector<8x256xf32>
    %cst = arith.constant 0.000000e+00 : f32
    %29 = vector.broadcast %cst : f32 to vector<8x256xf32>
    %30 = arith.maximumf %28, %29 : vector<8x256xf32>
    %c0_6 = arith.constant 0 : index
    %c0_7 = arith.constant 0 : index
    %c0_8 = arith.constant 0 : index
    %31 = vector.load %arg6[%c0_6, %c0_7, %c0_8] : memref<1x8x256xf32, #tpu.memory_space<vmem>>, vector<1x8x256xf32>
    %32 = vector.shape_cast %31 : vector<1x8x256xf32> to vector<8x256xf32>
    %33 = vector.shape_cast %30 : vector<8x256xf32> to vector<1x8x256xf32>
    tpu.vector_store %arg6[%c0_6, %c0_7, %c0_8], %33 {strides = array<i32>} : memref<1x8x256xf32, #tpu.memory_space<vmem>>, vector<1x8x256xf32>,
    return
  }
  func.func @transform_0(%arg0: i32, %arg1: i32, %arg2: i32) -> (i32, i32, i32) {
    %c0_i32 = arith.constant 0 : i32
    %c0_i32_0 = arith.constant 0 : i32
    return %arg0, %c0_i32, %arg2 : i32, i32, i32
  }
  func.func @transform_1(%arg0: i32, %arg1: i32, %arg2: i32) -> (i32, i32) {
    %c0_i32 = arith.constant 0 : i32
    %c0_i32_0 = arith.constant 0 : i32
    return %arg1, %c0_i32 : i32, i32
  }
  func.func @transform_2(%arg0: i32, %arg1: i32, %arg2: i32) -> (i32, i32) {
    %c0_i32 = arith.constant 0 : i32
    %c0_i32_0 = arith.constant 0 : i32
    return %arg1, %c0_i32 : i32, i32
  }
  func.func @transform_3(%arg0: i32, %arg1: i32, %arg2: i32) -> (i32, i32, i32) {
    %c0_i32 = arith.constant 0 : i32
    return %arg0, %arg1, %arg2 : i32, i32, i32
  }
}

module attributes {stable_mosaic.version = 11 : i64} {
  func.func @_conv_relu_1x1_vpu_kernel(%arg0: i32, %arg1: i32, %arg2: i32, %arg3: memref<1x4x256xf32, #tpu.memory_space<vmem>>, %arg4: memref<8x4xf32, #tpu.memory_space<vmem>>, %arg5: memref<8x1xf32, #tpu.memory_space<vmem>>, %arg6: memref<1x8x256xf32, #tpu.memory_space<vmem>>) attributes {dimension_semantics = [#tpu.dimension_semantics<parallel>, #tpu.dimension_semantics<parallel>, #tpu.dimension_semantics<parallel>], iteration_bounds = array<i64: 2, 1, 1>, scalar_prefetch = 0 : i64, scratch_operands = 0 : i64, tpu.core_type = #tpu.core_type<tc>, window_params = [{transform_indices = @transform_0, window_bounds = array<i64: 1, 4, 256>}, {transform_indices = @transform_1, window_bounds = array<i64: 8, 4>}, {transform_indices = @transform_2, window_bounds = array<i64: 8, 1>}, {transform_indices = @transform_3, window_bounds = array<i64: 1, 8, 256>}]} {
    %c0 = arith.constant 0 : index
    %c0_0 = arith.constant 0 : index
    %c0_1 = arith.constant 0 : index
    %0 = vector.load %arg3[%c0, %c0_0, %c0_1] : memref<1x4x256xf32, #tpu.memory_space<vmem>>, vector<1x4x256xf32>
    %1 = vector.shape_cast %0 : vector<1x4x256xf32> to vector<4x256xf32>
    %c0_2 = arith.constant 0 : index
    %c0_3 = arith.constant 0 : index
    %2 = vector.load %arg4[%c0_2, %c0_3] : memref<8x4xf32, #tpu.memory_space<vmem>>, vector<8x4xf32>
    %c0_4 = arith.constant 0 : index
    %c0_5 = arith.constant 0 : index
    %3 = vector.load %arg5[%c0_4, %c0_5] : memref<8x1xf32, #tpu.memory_space<vmem>>, vector<8x1xf32>
    %4 = vector.extract_strided_slice %2 {offsets = [0, 0], sizes = [8, 1], strides = [1, 1]} : vector<8x4xf32> to vector<8x1xf32>
    %5 = vector.extract_strided_slice %1 {offsets = [0, 0], sizes = [1, 256], strides = [1, 1]} : vector<4x256xf32> to vector<1x256xf32>
    %6 = vector.broadcast %4 : vector<8x1xf32> to vector<8x256xf32>
    %7 = vector.broadcast %5 : vector<1x256xf32> to vector<8x256xf32>
    %8 = arith.mulf %6, %7 : vector<8x256xf32>
    %9 = vector.extract_strided_slice %2 {offsets = [0, 1], sizes = [8, 1], strides = [1, 1]} : vector<8x4xf32> to vector<8x1xf32>
    %10 = vector.extract_strided_slice %1 {offsets = [1, 0], sizes = [1, 256], strides = [1, 1]} : vector<4x256xf32> to vector<1x256xf32>
    %11 = vector.broadcast %9 : vector<8x1xf32> to vector<8x256xf32>
    %12 = vector.broadcast %10 : vector<1x256xf32> to vector<8x256xf32>
    %13 = arith.mulf %11, %12 : vector<8x256xf32>
    %14 = arith.addf %8, %13 : vector<8x256xf32>
    %15 = vector.extract_strided_slice %2 {offsets = [0, 2], sizes = [8, 1], strides = [1, 1]} : vector<8x4xf32> to vector<8x1xf32>
    %16 = vector.extract_strided_slice %1 {offsets = [2, 0], sizes = [1, 256], strides = [1, 1]} : vector<4x256xf32> to vector<1x256xf32>
    %17 = vector.broadcast %15 : vector<8x1xf32> to vector<8x256xf32>
    %18 = vector.broadcast %16 : vector<1x256xf32> to vector<8x256xf32>
    %19 = arith.mulf %17, %18 : vector<8x256xf32>
    %20 = arith.addf %14, %19 : vector<8x256xf32>
    %21 = vector.extract_strided_slice %2 {offsets = [0, 3], sizes = [8, 1], strides = [1, 1]} : vector<8x4xf32> to vector<8x1xf32>
    %22 = vector.extract_strided_slice %1 {offsets = [3, 0], sizes = [1, 256], strides = [1, 1]} : vector<4x256xf32> to vector<1x256xf32>
    %23 = vector.broadcast %21 : vector<8x1xf32> to vector<8x256xf32>
    %24 = vector.broadcast %22 : vector<1x256xf32> to vector<8x256xf32>
    %25 = arith.mulf %23, %24 : vector<8x256xf32>
    %26 = arith.addf %20, %25 : vector<8x256xf32>
    %27 = vector.broadcast %3 : vector<8x1xf32> to vector<8x256xf32>
    %28 = arith.addf %26, %27 : vector<8x256xf32>
    %cst = arith.constant 0.000000e+00 : f32
    %29 = vector.broadcast %cst : f32 to vector<8x256xf32>
    %30 = arith.maximumf %28, %29 : vector<8x256xf32>
    %c0_6 = arith.constant 0 : index
    %c0_7 = arith.constant 0 : index
    %c0_8 = arith.constant 0 : index
    %31 = vector.load %arg6[%c0_6, %c0_7, %c0_8] : memref<1x8x256xf32, #tpu.memory_space<vmem>>, vector<1x8x256xf32>
    %32 = vector.shape_cast %31 : vector<1x8x256xf32> to vector<8x256xf32>
    %33 = vector.shape_cast %30 : vector<8x256xf32> to vector<1x8x256xf32>
    tpu.vector_store %arg6[%c0_6, %c0_7, %c0_8], %33 {strides = array<i32>} : memref<1x8x256xf32, #tpu.memory_space<vmem>>, vector<1x8x256xf32>,
    return
  }
  func.func @transform_0(%arg0: i32, %arg1: i32, %arg2: i32) -> (i32, i32, i32) {
    %c0_i32 = arith.constant 0 : i32
    %c0_i32_0 = arith.constant 0 : i32
    return %arg0, %c0_i32, %arg2 : i32, i32, i32
  }
  func.func @transform_1(%arg0: i32, %arg1: i32, %arg2: i32) -> (i32, i32) {
    %c0_i32 = arith.constant 0 : i32
    %c0_i32_0 = arith.constant 0 : i32
    return %arg1, %c0_i32 : i32, i32
  }
  func.func @transform_2(%arg0: i32, %arg1: i32, %arg2: i32) -> (i32, i32) {
    %c0_i32 = arith.constant 0 : i32
    %c0_i32_0 = arith.constant 0 : i32
    return %arg1, %c0_i32 : i32, i32
  }
  func.func @transform_3(%arg0: i32, %arg1: i32, %arg2: i32) -> (i32, i32, i32) {
    %c0_i32 = arith.constant 0 : i32
    return %arg0, %arg1, %arg2 : i32, i32, i32
  }
}

</mosaic_0001>

<llo_original>
// kernel: tpu_custom_call.1
$region0: #{tpu_custom_call.1}
  #allocation0 [shape = 'u32[]', space=smem, size = 0x4, offset = 0x4, fixed_abs, tag = 'smem constant byte address 0x4 - core index']
  #allocation1 [shape = 'u32[144,128]{1,0:T(1,128)}', space=vmem, size = 0x12000, scoped, tag = 'internal scratch']
  %s0 = inlined_call_operand.vmem [shape: f32[2,4,256], index: 0, kind: input, shape index: {}]
  %s1 = inlined_call_operand.vmem [shape: f32[8,4], index: 1, kind: input, shape index: {}]
  %s2 = inlined_call_operand.vmem [shape: f32[8,1], index: 2, kind: input, shape index: {}]
  %s3 = inlined_call_operand.hbm [shape: f32[2,8,256], index: 3, kind: output, shape index: {}]
  %s4 = sld [smem:[#allocation0]]
  $region45: #{tpu_custom_call.1} parent=0
    _
  %s6 = ssub.s32 1, %s4
  %s7 = scalar_select 0, %s6, %s4
  $region1: #{tpu_custom_call.1} parent=0
    #allocation2 [shape = 'u8[16384]{0}', space=vmem, size = 0x4000, scoped, tag = 'output window, operand 0']
    #allocation3 [shape = 's32[2]{0}', space=sflag, size = 0x8, scoped, tag = 'scoped memory for tpu_custom_call.1']
    %8 = vsyncpa [#allocation3], 0
    %s9 = scalar_lea.sflag [#allocation3], 1
    %10 = vsyncpa %s9, 0
    loop: start=0, step=1, limit=4
    $region2: #{tpu_custom_call.1} parent=1 // loop_pre_header
      _
    $region3: #{tpu_custom_call.1} parent=1 // loop_header
      %s12 = sphi 0, %s16
      %p13 = scmp.ge.s32.totalorder %s12, 4
      %s19 = sphi 0, %s38
      %s20 = sphi 0, %s34
      %s21 = sphi 0, %s30
      %s22 = sphi 0, %s19
      %s23 = sphi 0, %s20
      %s24 = sphi 0, %s21
      %s25 = sphi 0, %s22
      %s26 = sphi 0, %s23
      %s27 = sphi 0, %s24
      %s43 = sphi 0, %s45
      %s46 = sphi 0, %s43
      %s47 = sphi 0, %s46
      %s63 = sphi 0, %s47
      %s69 = sphi 0, %s71
      %s72 = sphi 0, %s69
      %s73 = sphi 0, %s72
      %s89 = sphi 0, %s73
      %s95 = sphi 0, %s97
      %s98 = sphi 0, %s95
      %s99 = sphi 0, %s98
      %s115 = sphi 0, %s99
      %s125 = sphi 0, %s127
      %s128 = sphi 0, %s125
      %s129 = sphi 0, %s128
      %s145 = sphi 0, %s129
    $region4: #{tpu_custom_call.1} parent=1 // loop_header_branch
      %15 = sbr.rel (%p13) target = $region8
    $region5: #{tpu_custom_call.1} parent=1 // loop_body
      %s17 = ssub.s32 %s12, 1
      %s18 = ssub.s32 %s12, 2
      %s28 = sadd.s32 1, %s21
      %p29 = scmp.ge.s32.totalorder %s28, 1
      %s30 = scalar_select %p29, 0, %s28
      %s31 = sadd.s32 1, %s20
      %s32 = scalar_select %p29, %s31, %s20
      %p33 = scmp.ge.s32.totalorder %s32, 1
      %s34 = scalar_select %p33, 0, %s32
      %s35 = sadd.s32 1, %s19
      %s36 = scalar_select %p33, %s35, %s19
      %p37 = scmp.ge.s32.totalorder %s36, 2
      %s38 = scalar_select %p37, 0, %s36
      %s39 = ssub.s32 %s19, %s38
      %s40 = ssub.s32 %s21, %s30
      %s41 = sor.u32 %s39, %s40
      %p42 = scmp.eq.s32.totalorder %s41, 0
      %s44 = sadd.s32 %s43, 1
      %s45 = scalar_select %p42, %s43, %s44
      %p48 = pneg %p42
      %p49 = scmp.eq.s32.totalorder %s12, 1
      %p50 = por %p48, %p49
      %p51 = scmp.ne.s32.totalorder %s43, %s46
      %p52 = scmp.eq.s32.totalorder %s12, 0
      %p53 = por %p51, %p52
      %p54 = scmp.ne.s32.totalorder %s43, %s46
      %p55 = scmp.eq.s32.totalorder %s17, 1
      %p56 = por %p54, %p55
      %p57 = scmp.ne.s32.totalorder %s46, %s47
      %p58 = scmp.eq.s32.totalorder %s17, 0
      %p59 = por %p57, %p58
      %p60 = scmp.ne.s32.totalorder %s46, %s47
      %p61 = scmp.eq.s32.totalorder %s18, 1
      %p62 = por %p60, %p61
      %p64 = scmp.ne.s32.totalorder %s47, %s63
      %p65 = scmp.eq.s32.totalorder %s18, 0
      %p66 = por %p64, %p65
      %s67 = ssub.s32 %s20, %s34
      %p68 = scmp.eq.s32.totalorder %s67, 0
      %s70 = sadd.s32 %s69, 1
      %s71 = scalar_select %p68, %s69, %s70
      %p74 = pneg %p68
      %p75 = scmp.eq.s32.totalorder %s12, 1
      %p76 = por %p74, %p75
      %p77 = scmp.ne.s32.totalorder %s69, %s72
      %p78 = scmp.eq.s32.totalorder %s12, 0
      %p79 = por %p77, %p78
      %p80 = scmp.ne.s32.totalorder %s69, %s72
      %p81 = scmp.eq.s32.totalorder %s17, 1
      %p82 = por %p80, %p81
      %p83 = scmp.ne.s32.totalorder %s72, %s73
      %p84 = scmp.eq.s32.totalorder %s17, 0
      %p85 = por %p83, %p84
      %p86 = scmp.ne.s32.totalorder %s72, %s73
      %p87 = scmp.eq.s32.totalorder %s18, 1
      %p88 = por %p86, %p87
      %p90 = scmp.ne.s32.totalorder %s73, %s89
      %p91 = scmp.eq.s32.totalorder %s18, 0
      %p92 = por %p90, %p91
      %s93 = ssub.s32 %s20, %s34
      %p94 = scmp.eq.s32.totalorder %s93, 0
      %s96 = sadd.s32 %s95, 1
      %s97 = scalar_select %p94, %s95, %s96
      %p100 = pneg %p94
      %p101 = scmp.eq.s32.totalorder %s12, 1
      %p102 = por %p100, %p101
      %p103 = scmp.ne.s32.totalorder %s95, %s98
      %p104 = scmp.eq.s32.totalorder %s12, 0
      %p105 = por %p103, %p104
      %p106 = scmp.ne.s32.totalorder %s95, %s98
      %p107 = scmp.eq.s32.totalorder %s17, 1
      %p108 = por %p106, %p107
      %p109 = scmp.ne.s32.totalorder %s98, %s99
      %p110 = scmp.eq.s32.totalorder %s17, 0
      %p111 = por %p109, %p110
      %p112 = scmp.ne.s32.totalorder %s98, %s99
      %p113 = scmp.eq.s32.totalorder %s18, 1
      %p114 = por %p112, %p113
      %p116 = scmp.ne.s32.totalorder %s99, %s115
      %p117 = scmp.eq.s32.totalorder %s18, 0
      %p118 = por %p116, %p117
      %s119 = ssub.s32 %s19, %s38
      %s120 = ssub.s32 %s20, %s34
      %s121 = sor.u32 %s119, %s120
      %s122 = ssub.s32 %s21, %s30
      %s123 = sor.u32 %s121, %s122
      %p124 = scmp.eq.s32.totalorder %s123, 0
      %s126 = sadd.s32 %s125, 1
      %s127 = scalar_select %p124, %s125, %s126
      %p130 = pneg %p124
      %p131 = scmp.eq.s32.totalorder %s12, 1
      %p132 = por %p130, %p131
      %p133 = scmp.ne.s32.totalorder %s125, %s128
      %p134 = scmp.eq.s32.totalorder %s12, 0
      %p135 = por %p133, %p134
      %p136 = scmp.ne.s32.totalorder %s125, %s128
      %p137 = scmp.eq.s32.totalorder %s17, 1
      %p138 = por %p136, %p137
      %p139 = scmp.ne.s32.totalorder %s128, %s129
      %p140 = scmp.eq.s32.totalorder %s17, 0
      %p141 = por %p139, %p140
      %p142 = scmp.ne.s32.totalorder %s128, %s129
      %p143 = scmp.eq.s32.totalorder %s18, 1
      %p144 = por %p142, %p143
      %p146 = scmp.ne.s32.totalorder %s129, %s145
      %p147 = scmp.eq.s32.totalorder %s18, 0
      %p148 = por %p146, %p147
      %p149 = scmp.le.s32.totalorder 1, %s12
      %p150 = scmp.lt.s32.totalorder %s12, 3
      %p151 = pnand %p149, %p150
      %p152 = pneg %p151
      // Predicated region
      $region9: #{tpu_custom_call.1} parent=5 // pred_check
        _
      $region10: #{tpu_custom_call.1} parent=5 // pred_check_branch
        %154 = sbr.rel (%p151) target = $region12
      $region11: #{tpu_custom_call.1} parent=5 // pred_region
        %s155 = ssub.s32 %s12, 1
        // Predicated region
        $region13: #{tpu_custom_call.1} parent=11 // pred_check
          %p156 = pneg %p85
        $region14: #{tpu_custom_call.1} parent=11 // pred_check_branch
          %158 = sbr.rel (%p156) target = $region16
        $region15: #{tpu_custom_call.1} parent=11 // pred_region
          %p159 = scmp.lt.s32.totalorder %s23, 0
          %s160 = scalar_select %p159, %s23, 0
          %s161 = smul.addr %s160, 8
          %s162 = scalar_lea.vmem %s1, %s161
        $region16: #{tpu_custom_call.1} parent=11 // pred_fallthru
          _
        // Predicated region
        $region17: #{tpu_custom_call.1} parent=11 // pred_check
          %p163 = pneg %p111
        $region18: #{tpu_custom_call.1} parent=11 // pred_check_branch
          %165 = sbr.rel (%p163) target = $region20
        $region19: #{tpu_custom_call.1} parent=11 // pred_region
          %p166 = scmp.lt.s32.totalorder %s23, 0
          %s167 = scalar_select %p166, %s23, 0
          %s168 = smul.addr %s167, 8
          %s169 = scalar_lea.vmem %s2, %s168
        $region20: #{tpu_custom_call.1} parent=11 // pred_fallthru
          _
      $region12: #{tpu_custom_call.1} parent=5 // pred_fallthru
        _
      %p170 = scmp.lt.s32.totalorder %s12, 2
      // Predicated region
      $region21: #{tpu_custom_call.1} parent=5 // pred_check
        %p171 = pneg %p170
      $region22: #{tpu_custom_call.1} parent=5 // pred_check_branch
        %173 = sbr.rel (%p171) target = $region24
      $region23: #{tpu_custom_call.1} parent=5 // pred_region
        // Predicated region
        $region25: #{tpu_custom_call.1} parent=23 // pred_check
          %p174 = pneg %p53
        $region26: #{tpu_custom_call.1} parent=23 // pred_check_branch
          %176 = sbr.rel (%p174) target = $region28
        $region27: #{tpu_custom_call.1} parent=23 // pred_region
          %s177 = smul.u32 2, %s21
          %p178 = scmp.lt.s32.totalorder %s19, 1
          %s179 = scalar_select %p178, %s19, 1
          %p180 = scmp.lt.s32.totalorder %s177, 1
          %s181 = scalar_select %p180, %s177, 1
          %s182 = smul.addr %s179, 2
          %s183 = sadd.s32 %s181, %s182
          %s184 = smul.addr %s183, 4
          %s185 = scalar_lea.vmem %s0, %s184
          %s186 = smul.u32 2, %s21
        $region28: #{tpu_custom_call.1} parent=23 // pred_fallthru
          _
      $region24: #{tpu_custom_call.1} parent=5 // pred_fallthru
        _
      %p187 = scmp.le.s32.totalorder 1, %s12
      %p188 = scmp.lt.s32.totalorder %s12, 3
      %p189 = pnand %p187, %p188
      %p190 = pneg %p189
      // Predicated region
      $region29: #{tpu_custom_call.1} parent=5 // pred_check
        _
      $region30: #{tpu_custom_call.1} parent=5 // pred_check_branch
        %192 = sbr.rel (%p189) target = $region32
      $region31: #{tpu_custom_call.1} parent=5 // pred_region
        %s193 = ssub.s32 %s12, 1
        %s194 = smul.u32 2, %s24
        %p195 = scmp.lt.s32.totalorder %s22, 1
        %s196 = scalar_select %p195, %s22, 1
        %p197 = scmp.lt.s32.totalorder %s194, 1
        %s198 = scalar_select %p197, %s194, 1
        %s199 = smul.addr %s196, 2
        %s200 = sadd.s32 %s198, %s199
        %s201 = smul.addr %s200, 4
        %s202 = scalar_lea.vmem %s0, %s201
        %p203 = pneg %p59
        %p204 = pneg %p56
        %p205 = scmp.lt.s32.totalorder %s23, 0
        %s206 = scalar_select %p205, %s23, 0
        %s207 = smul.addr %s206, 8
        %s208 = scalar_lea.vmem %s1, %s207
        %p209 = pneg %p85
        %p210 = pneg %p82
        %p211 = scmp.lt.s32.totalorder %s23, 0
        %s212 = scalar_select %p211, %s23, 0
        %s213 = smul.addr %s212, 8
        %s214 = scalar_lea.vmem %s2, %s213
        %p215 = pneg %p111
        %p216 = pneg %p108
        %p217 = pneg %p141
        %p218 = pneg %p138
        %s219 = sand.u32 %s128, 1
        %s220 = scalar_lea.sflag [#allocation3], %s219
        %s221 = sand.u32 %s128, 1
        %s222 = smul.addr %s221, 16
        %s223 = scalar_lea.vmem [#allocation2], %s222
        %s224 = smul.u32 2, %s24
        %p225 = scmp.lt.s32.totalorder %s22, 1
        %s226 = scalar_select %p225, %s22, 1
        %p227 = scmp.lt.s32.totalorder %s224, 1
        %s228 = scalar_select %p227, %s224, 1
        %s229 = smul.addr %s226, 2
        %s230 = sadd.s32 %s228, %s229
        %s231 = smul.addr %s230, 4
        %s232 = scalar_lea.vmem %s0, %s231
        %s233 = smul.u32 2, %s24
        %p234 = scmp.lt.s32.totalorder %s23, 0
        %s235 = scalar_select %p234, %s23, 0
        %s236 = smul.addr %s235, 8
        %s237 = scalar_lea.vmem %s1, %s236
        %p238 = scmp.lt.s32.totalorder %s23, 0
        %s239 = scalar_select %p238, %s23, 0
        %s240 = smul.addr %s239, 8
        %s241 = scalar_lea.vmem %s2, %s240
        %s242 = smul.u32 2, %s24
        %v243 = vld [vmem:[%s232] sm:$0xff]
        %v244 = vld [vmem:[%s237] sm:$0xff]
        %v245 = vld [vmem:[%s241] sm:$0xff]
        %247 = vset.pattern.permute.xlu0 0
        %248 = vperm.xlu0 %247, %v244
        %v249 = vpop.permute.xlu0 %248
        %v252 = vlaneseq
        %v253 = vshrl.u32 %v252, 7
        %v254 = vsub.s32 0, %v253
        %v255 = vrot.slane %v243, %v254
        %v256 = vlaneseq
        %v257 = vshrl.u32 %v256, 7
        %v258 = vsub.s32 4, %v257
        %v259 = vrot.slane %v243, %v258
        %v262 = vlaneseq
        %v263 = vshrl.u32 %v262, 7
        %v264 = vsub.s32 0, %v263
        %v265 = vrot.slane %v255, %v264
        %v266 = vlaneseq
        %v267 = vshrl.u32 %v266, 7
        %v268 = vsub.s32 0, %v267
        %v269 = vrot.slane %v259, %v268
        %v270 = vmul.f32 %v249, %v265
        %v271 = vmul.f32 %v249, %v269
        %272 = vset.pattern.permute.xlu0 1
        %273 = vperm.xlu0 %272, %v244
        %v274 = vpop.permute.xlu0 %273
        %v276 = vlaneseq
        %v277 = vshrl.u32 %v276, 7
        %v278 = vsub.s32 1, %v277
        %v279 = vrot.slane %v243, %v278
        %v280 = vlaneseq
        %v281 = vshrl.u32 %v280, 7
        %v282 = vsub.s32 5, %v281
        %v283 = vrot.slane %v243, %v282
        %v286 = vlaneseq
        %v287 = vshrl.u32 %v286, 7
        %v288 = vsub.s32 1, %v287
        %v289 = vrot.slane %v279, %v288
        %v290 = vlaneseq
        %v291 = vshrl.u32 %v290, 7
        %v292 = vsub.s32 1, %v291
        %v293 = vrot.slane %v283, %v292
        %v294 = vmul.f32 %v274, %v289
        %v295 = vmul.f32 %v274, %v293
        %v296 = vadd.f32 %v270, %v294
        %v297 = vadd.f32 %v271, %v295
        %298 = vset.pattern.permute.xlu0 2
        %299 = vperm.xlu0 %298, %v244
        %v300 = vpop.permute.xlu0 %299
        %v302 = vlaneseq
        %v303 = vshrl.u32 %v302, 7
        %v304 = vsub.s32 2, %v303
        %v305 = vrot.slane %v243, %v304
        %v306 = vlaneseq
        %v307 = vshrl.u32 %v306, 7
        %v308 = vsub.s32 6, %v307
        %v309 = vrot.slane %v243, %v308
        %v312 = vlaneseq
        %v313 = vshrl.u32 %v312, 7
        %v314 = vsub.s32 2, %v313
        %v315 = vrot.slane %v305, %v314
        %v316 = vlaneseq
        %v317 = vshrl.u32 %v316, 7
        %v318 = vsub.s32 2, %v317
        %v319 = vrot.slane %v309, %v318
        %v320 = vmul.f32 %v300, %v315
        %v321 = vmul.f32 %v300, %v319
        %v322 = vadd.f32 %v296, %v320
        %v323 = vadd.f32 %v297, %v321
        %324 = vset.pattern.permute.xlu0 3
        %325 = vperm.xlu0 %324, %v244
        %v326 = vpop.permute.xlu0 %325
        %v328 = vlaneseq
        %v329 = vshrl.u32 %v328, 7
        %v330 = vsub.s32 3, %v329
        %v331 = vrot.slane %v243, %v330
        %v332 = vlaneseq
        %v333 = vshrl.u32 %v332, 7
        %v334 = vsub.s32 7, %v333
        %v335 = vrot.slane %v243, %v334
        %v338 = vlaneseq
        %v339 = vshrl.u32 %v338, 7
        %v340 = vsub.s32 3, %v339
        %v341 = vrot.slane %v331, %v340
        %v342 = vlaneseq
        %v343 = vshrl.u32 %v342, 7
        %v344 = vsub.s32 3, %v343
        %v345 = vrot.slane %v335, %v344
        %v346 = vmul.f32 %v326, %v341
        %v347 = vmul.f32 %v326, %v345
        %v348 = vadd.f32 %v322, %v346
        %v349 = vadd.f32 %v323, %v347
        %351 = vset.pattern.permute.xlu0 0
        %352 = vperm.xlu0 %351, %v245
        %v353 = vpop.permute.xlu0 %352
        %v355 = vadd.f32 %v348, %v353
        %v356 = vadd.f32 %v349, %v353
        %v357 = vmax.f32 %v355, 0.0
        %v358 = vmax.f32 %v356, 0.0
        %359 = vst [vmem:[%s223] sm:$0xff] %v357
        %360 = vst [vmem:[%s223 + $0x8] sm:$0xff] %v358
        %s361 = sand.u32 %s128, 1
        %s362 = scalar_lea.sflag [#allocation3], %s361
        %s363 = sand.u32 %s128, 1
        %s364 = smul.addr %s363, 16
        %s365 = scalar_lea.vmem [#allocation2], %s364
        // Predicated region
        $region33: #{tpu_custom_call.1} parent=31 // pred_check
          %p366 = pneg %p138
        $region34: #{tpu_custom_call.1} parent=31 // pred_check_branch
          %368 = sbr.rel (%p366) target = $region36
        $region35: #{tpu_custom_call.1} parent=31 // pred_region
          %s369 = smul.u32 2, %s24
          %s371 = ssub.s32 256, 256
          %372 = vsyncadd %s362, %s371
          %s373 = smul.addr %s23, 2
          %s374 = sadd.s32 %s369, %s373
          %s375 = smul.addr %s22, 2
          %s376 = sadd.s32 %s374, %s375
          %s377 = smul.addr %s376, 128
          %s378 = scalar_lea.hbm %s3, %s377
          %s380 = sshll.u32 %s365, 4
          %s381 = int_to_ptr.vmem [resolvable:$true] %s380
          %383 = dma.vmem_to_hbm [thread:$0]  %s381, 256, %s378, %s362
        $region36: #{tpu_custom_call.1} parent=31 // pred_fallthru
          _
      $region32: #{tpu_custom_call.1} parent=5 // pred_fallthru
        _
      %p384 = scmp.le.s32.totalorder 2, %s12
      // Predicated region
      $region37: #{tpu_custom_call.1} parent=5 // pred_check
        %p385 = pneg %p384
      $region38: #{tpu_custom_call.1} parent=5 // pred_check_branch
        %387 = sbr.rel (%p385) target = $region40
      $region39: #{tpu_custom_call.1} parent=5 // pred_region
        %s388 = ssub.s32 %s12, 2
        // Predicated region
        $region41: #{tpu_custom_call.1} parent=39 // pred_check
          %p389 = pneg %p144
        $region42: #{tpu_custom_call.1} parent=39 // pred_check_branch
          %391 = sbr.rel (%p389) target = $region44
        $region43: #{tpu_custom_call.1} parent=39 // pred_region
          %s392 = sand.u32 %s129, 1
          %s393 = scalar_lea.sflag [#allocation3], %s392
          %s394 = sand.u32 %s129, 1
          %s395 = smul.addr %s394, 16
          %s396 = scalar_lea.vmem [#allocation2], %s395
          %397 = dma.done %s393, 256
        $region44: #{tpu_custom_call.1} parent=39 // pred_fallthru
          _
      $region40: #{tpu_custom_call.1} parent=5 // pred_fallthru
        _
    $region6: #{tpu_custom_call.1} parent=1 // loop_footer
      %s16 = sadd.s32 1, %s12
    $region7: #{tpu_custom_call.1} parent=1 // loop_footer_branch
      %11 = sbr.rel target = $region3
    $region8: #{tpu_custom_call.1} parent=1 // loop_exit
      _
    %398 = vsyncpa [#allocation3], 1
    %s399 = scalar_lea.sflag [#allocation3], 1
    %400 = vsyncpa %s399, 1

// kernel: tpu_custom_call.1
$region0: #{tpu_custom_call.1}
  #allocation0 [shape = 'u32[]', space=smem, size = 0x4, offset = 0x4, fixed_abs, tag = 'smem constant byte address 0x4 - core index']
  #allocation1 [shape = 'u32[144,128]{1,0:T(1,128)}', space=vmem, size = 0x12000, scoped, tag = 'internal scratch']
  %s0 = inlined_call_operand.vmem [shape: f32[2,4,256], index: 0, kind: input, shape index: {}]
  %s1 = inlined_call_operand.vmem [shape: f32[8,4], index: 1, kind: input, shape index: {}]
  %s2 = inlined_call_operand.vmem [shape: f32[8,1], index: 2, kind: input, shape index: {}]
  %s3 = inlined_call_operand.hbm [shape: f32[2,8,256], index: 3, kind: output, shape index: {}]
  %s4 = sld [smem:[#allocation0]]
  $region45: #{tpu_custom_call.1} parent=0
    _
  %s6 = ssub.s32 1, %s4
  %s7 = scalar_select 0, %s6, %s4
  $region1: #{tpu_custom_call.1} parent=0
    #allocation2 [shape = 'u8[16384]{0}', space=vmem, size = 0x4000, scoped, tag = 'output window, operand 0']
    #allocation3 [shape = 's32[2]{0}', space=sflag, size = 0x8, scoped, tag = 'scoped memory for tpu_custom_call.1']
    %8 = vsyncpa [#allocation3], 0
    %s9 = scalar_lea.sflag [#allocation3], 1
    %10 = vsyncpa %s9, 0
    loop: start=0, step=1, limit=4
    $region2: #{tpu_custom_call.1} parent=1 // loop_pre_header
      _
    $region3: #{tpu_custom_call.1} parent=1 // loop_header
      %s12 = sphi 0, %s16
      %p13 = scmp.ge.s32.totalorder %s12, 4
      %s19 = sphi 0, %s38
      %s20 = sphi 0, %s34
      %s21 = sphi 0, %s30
      %s22 = sphi 0, %s19
      %s23 = sphi 0, %s20
      %s24 = sphi 0, %s21
      %s25 = sphi 0, %s22
      %s26 = sphi 0, %s23
      %s27 = sphi 0, %s24
      %s43 = sphi 0, %s45
      %s46 = sphi 0, %s43
      %s47 = sphi 0, %s46
      %s63 = sphi 0, %s47
      %s69 = sphi 0, %s71
      %s72 = sphi 0, %s69
      %s73 = sphi 0, %s72
      %s89 = sphi 0, %s73
      %s95 = sphi 0, %s97
      %s98 = sphi 0, %s95
      %s99 = sphi 0, %s98
      %s115 = sphi 0, %s99
      %s125 = sphi 0, %s127
      %s128 = sphi 0, %s125
      %s129 = sphi 0, %s128
      %s145 = sphi 0, %s129
    $region4: #{tpu_custom_call.1} parent=1 // loop_header_branch
      %15 = sbr.rel (%p13) target = $region8
    $region5: #{tpu_custom_call.1} parent=1 // loop_body
      %s17 = ssub.s32 %s12, 1
      %s18 = ssub.s32 %s12, 2
      %s28 = sadd.s32 1, %s21
      %p29 = scmp.ge.s32.totalorder %s28, 1
      %s30 = scalar_select %p29, 0, %s28
      %s31 = sadd.s32 1, %s20
      %s32 = scalar_select %p29, %s31, %s20
      %p33 = scmp.ge.s32.totalorder %s32, 1
      %s34 = scalar_select %p33, 0, %s32
      %s35 = sadd.s32 1, %s19
      %s36 = scalar_select %p33, %s35, %s19
      %p37 = scmp.ge.s32.totalorder %s36, 2
      %s38 = scalar_select %p37, 0, %s36
      %s39 = ssub.s32 %s19, %s38
      %s40 = ssub.s32 %s21, %s30
      %s41 = sor.u32 %s39, %s40
      %p42 = scmp.eq.s32.totalorder %s41, 0
      %s44 = sadd.s32 %s43, 1
      %s45 = scalar_select %p42, %s43, %s44
      %p48 = pneg %p42
      %p49 = scmp.eq.s32.totalorder %s12, 1
      %p50 = por %p48, %p49
      %p51 = scmp.ne.s32.totalorder %s43, %s46
      %p52 = scmp.eq.s32.totalorder %s12, 0
      %p53 = por %p51, %p52
      %p54 = scmp.ne.s32.totalorder %s43, %s46
      %p55 = scmp.eq.s32.totalorder %s17, 1
      %p56 = por %p54, %p55
      %p57 = scmp.ne.s32.totalorder %s46, %s47
      %p58 = scmp.eq.s32.totalorder %s17, 0
      %p59 = por %p57, %p58
      %p60 = scmp.ne.s32.totalorder %s46, %s47
      %p61 = scmp.eq.s32.totalorder %s18, 1
      %p62 = por %p60, %p61
      %p64 = scmp.ne.s32.totalorder %s47, %s63
      %p65 = scmp.eq.s32.totalorder %s18, 0
      %p66 = por %p64, %p65
      %s67 = ssub.s32 %s20, %s34
      %p68 = scmp.eq.s32.totalorder %s67, 0
      %s70 = sadd.s32 %s69, 1
      %s71 = scalar_select %p68, %s69, %s70
      %p74 = pneg %p68
      %p75 = scmp.eq.s32.totalorder %s12, 1
      %p76 = por %p74, %p75
      %p77 = scmp.ne.s32.totalorder %s69, %s72
      %p78 = scmp.eq.s32.totalorder %s12, 0
      %p79 = por %p77, %p78
      %p80 = scmp.ne.s32.totalorder %s69, %s72
      %p81 = scmp.eq.s32.totalorder %s17, 1
      %p82 = por %p80, %p81
      %p83 = scmp.ne.s32.totalorder %s72, %s73
      %p84 = scmp.eq.s32.totalorder %s17, 0
      %p85 = por %p83, %p84
      %p86 = scmp.ne.s32.totalorder %s72, %s73
      %p87 = scmp.eq.s32.totalorder %s18, 1
      %p88 = por %p86, %p87
      %p90 = scmp.ne.s32.totalorder %s73, %s89
      %p91 = scmp.eq.s32.totalorder %s18, 0
      %p92 = por %p90, %p91
      %s93 = ssub.s32 %s20, %s34
      %p94 = scmp.eq.s32.totalorder %s93, 0
      %s96 = sadd.s32 %s95, 1
      %s97 = scalar_select %p94, %s95, %s96
      %p100 = pneg %p94
      %p101 = scmp.eq.s32.totalorder %s12, 1
      %p102 = por %p100, %p101
      %p103 = scmp.ne.s32.totalorder %s95, %s98
      %p104 = scmp.eq.s32.totalorder %s12, 0
      %p105 = por %p103, %p104
      %p106 = scmp.ne.s32.totalorder %s95, %s98
      %p107 = scmp.eq.s32.totalorder %s17, 1
      %p108 = por %p106, %p107
      %p109 = scmp.ne.s32.totalorder %s98, %s99
      %p110 = scmp.eq.s32.totalorder %s17, 0
      %p111 = por %p109, %p110
      %p112 = scmp.ne.s32.totalorder %s98, %s99
      %p113 = scmp.eq.s32.totalorder %s18, 1
      %p114 = por %p112, %p113
      %p116 = scmp.ne.s32.totalorder %s99, %s115
      %p117 = scmp.eq.s32.totalorder %s18, 0
      %p118 = por %p116, %p117
      %s119 = ssub.s32 %s19, %s38
      %s120 = ssub.s32 %s20, %s34
      %s121 = sor.u32 %s119, %s120
      %s122 = ssub.s32 %s21, %s30
      %s123 = sor.u32 %s121, %s122
      %p124 = scmp.eq.s32.totalorder %s123, 0
      %s126 = sadd.s32 %s125, 1
      %s127 = scalar_select %p124, %s125, %s126
      %p130 = pneg %p124
      %p131 = scmp.eq.s32.totalorder %s12, 1
      %p132 = por %p130, %p131
      %p133 = scmp.ne.s32.totalorder %s125, %s128
      %p134 = scmp.eq.s32.totalorder %s12, 0
      %p135 = por %p133, %p134
      %p136 = scmp.ne.s32.totalorder %s125, %s128
      %p137 = scmp.eq.s32.totalorder %s17, 1
      %p138 = por %p136, %p137
      %p139 = scmp.ne.s32.totalorder %s128, %s129
      %p140 = scmp.eq.s32.totalorder %s17, 0
      %p141 = por %p139, %p140
      %p142 = scmp.ne.s32.totalorder %s128, %s129
      %p143 = scmp.eq.s32.totalorder %s18, 1
      %p144 = por %p142, %p143
      %p146 = scmp.ne.s32.totalorder %s129, %s145
      %p147 = scmp.eq.s32.totalorder %s18, 0
      %p148 = por %p146, %p147
      %p149 = scmp.le.s32.totalorder 1, %s12
      %p150 = scmp.lt.s32.totalorder %s12, 3
      %p151 = pnand %p149, %p150
      %p152 = pneg %p151
      // Predicated region
      $region9: #{tpu_custom_call.1} parent=5 // pred_check
        _
      $region10: #{tpu_custom_call.1} parent=5 // pred_check_branch
        %154 = sbr.rel (%p151) target = $region12
      $region11: #{tpu_custom_call.1} parent=5 // pred_region
        %s155 = ssub.s32 %s12, 1
        // Predicated region
        $region13: #{tpu_custom_call.1} parent=11 // pred_check
          %p156 = pneg %p85
        $region14: #{tpu_custom_call.1} parent=11 // pred_check_branch
          %158 = sbr.rel (%p156) target = $region16
        $region15: #{tpu_custom_call.1} parent=11 // pred_region
          %p159 = scmp.lt.s32.totalorder %s23, 0
          %s160 = scalar_select %p159, %s23, 0
          %s161 = smul.addr %s160, 8
          %s162 = scalar_lea.vmem %s1, %s161
        $region16: #{tpu_custom_call.1} parent=11 // pred_fallthru
          _
        // Predicated region
        $region17: #{tpu_custom_call.1} parent=11 // pred_check
          %p163 = pneg %p111
        $region18: #{tpu_custom_call.1} parent=11 // pred_check_branch
          %165 = sbr.rel (%p163) target = $region20
        $region19: #{tpu_custom_call.1} parent=11 // pred_region
          %p166 = scmp.lt.s32.totalorder %s23, 0
          %s167 = scalar_select %p166, %s23, 0
          %s168 = smul.addr %s167, 8
          %s169 = scalar_lea.vmem %s2, %s168
        $region20: #{tpu_custom_call.1} parent=11 // pred_fallthru
          _
      $region12: #{tpu_custom_call.1} parent=5 // pred_fallthru
        _
      %p170 = scmp.lt.s32.totalorder %s12, 2
      // Predicated region
      $region21: #{tpu_custom_call.1} parent=5 // pred_check
        %p171 = pneg %p170
      $region22: #{tpu_custom_call.1} parent=5 // pred_check_branch
        %173 = sbr.rel (%p171) target = $region24
      $region23: #{tpu_custom_call.1} parent=5 // pred_region
        // Predicated region
        $region25: #{tpu_custom_call.1} parent=23 // pred_check
          %p174 = pneg %p53
        $region26: #{tpu_custom_call.1} parent=23 // pred_check_branch
          %176 = sbr.rel (%p174) target = $region28
        $region27: #{tpu_custom_call.1} parent=23 // pred_region
          %s177 = smul.u32 2, %s21
          %p178 = scmp.lt.s32.totalorder %s19, 1
          %s179 = scalar_select %p178, %s19, 1
          %p180 = scmp.lt.s32.totalorder %s177, 1
          %s181 = scalar_select %p180, %s177, 1
          %s182 = smul.addr %s179, 2
          %s183 = sadd.s32 %s181, %s182
          %s184 = smul.addr %s183, 4
          %s185 = scalar_lea.vmem %s0, %s184
          %s186 = smul.u32 2, %s21
        $region28: #{tpu_custom_call.1} parent=23 // pred_fallthru
          _
      $region24: #{tpu_custom_call.1} parent=5 // pred_fallthru
        _
      %p187 = scmp.le.s32.totalorder 1, %s12
      %p188 = scmp.lt.s32.totalorder %s12, 3
      %p189 = pnand %p187, %p188
      %p190 = pneg %p189
      // Predicated region
      $region29: #{tpu_custom_call.1} parent=5 // pred_check
        _
      $region30: #{tpu_custom_call.1} parent=5 // pred_check_branch
        %192 = sbr.rel (%p189) target = $region32
      $region31: #{tpu_custom_call.1} parent=5 // pred_region
        %s193 = ssub.s32 %s12, 1
        %s194 = smul.u32 2, %s24
        %p195 = scmp.lt.s32.totalorder %s22, 1
        %s196 = scalar_select %p195, %s22, 1
        %p197 = scmp.lt.s32.totalorder %s194, 1
        %s198 = scalar_select %p197, %s194, 1
        %s199 = smul.addr %s196, 2
        %s200 = sadd.s32 %s198, %s199
        %s201 = smul.addr %s200, 4
        %s202 = scalar_lea.vmem %s0, %s201
        %p203 = pneg %p59
        %p204 = pneg %p56
        %p205 = scmp.lt.s32.totalorder %s23, 0
        %s206 = scalar_select %p205, %s23, 0
        %s207 = smul.addr %s206, 8
        %s208 = scalar_lea.vmem %s1, %s207
        %p209 = pneg %p85
        %p210 = pneg %p82
        %p211 = scmp.lt.s32.totalorder %s23, 0
        %s212 = scalar_select %p211, %s23, 0
        %s213 = smul.addr %s212, 8
        %s214 = scalar_lea.vmem %s2, %s213
        %p215 = pneg %p111
        %p216 = pneg %p108
        %p217 = pneg %p141
        %p218 = pneg %p138
        %s219 = sand.u32 %s128, 1
        %s220 = scalar_lea.sflag [#allocation3], %s219
        %s221 = sand.u32 %s128, 1
        %s222 = smul.addr %s221, 16
        %s223 = scalar_lea.vmem [#allocation2], %s222
        %s224 = smul.u32 2, %s24
        %p225 = scmp.lt.s32.totalorder %s22, 1
        %s226 = scalar_select %p225, %s22, 1
        %p227 = scmp.lt.s32.totalorder %s224, 1
        %s228 = scalar_select %p227, %s224, 1
        %s229 = smul.addr %s226, 2
        %s230 = sadd.s32 %s228, %s229
        %s231 = smul.addr %s230, 4
        %s232 = scalar_lea.vmem %s0, %s231
        %s233 = smul.u32 2, %s24
        %p234 = scmp.lt.s32.totalorder %s23, 0
        %s235 = scalar_select %p234, %s23, 0
        %s236 = smul.addr %s235, 8
        %s237 = scalar_lea.vmem %s1, %s236
        %p238 = scmp.lt.s32.totalorder %s23, 0
        %s239 = scalar_select %p238, %s23, 0
        %s240 = smul.addr %s239, 8
        %s241 = scalar_lea.vmem %s2, %s240
        %s242 = smul.u32 2, %s24
        %v243 = vld [vmem:[%s232] sm:$0xff]
        %v244 = vld [vmem:[%s237] sm:$0xff]
        %v245 = vld [vmem:[%s241] sm:$0xff]
        %247 = vset.pattern.permute.xlu0 0
        %248 = vperm.xlu0 %247, %v244
        %v249 = vpop.permute.xlu0 %248
        %v252 = vlaneseq
        %v253 = vshrl.u32 %v252, 7
        %v254 = vsub.s32 0, %v253
        %v255 = vrot.slane %v243, %v254
        %v256 = vlaneseq
        %v257 = vshrl.u32 %v256, 7
        %v258 = vsub.s32 4, %v257
        %v259 = vrot.slane %v243, %v258
        %v262 = vlaneseq
        %v263 = vshrl.u32 %v262, 7
        %v264 = vsub.s32 0, %v263
        %v265 = vrot.slane %v255, %v264
        %v266 = vlaneseq
        %v267 = vshrl.u32 %v266, 7
        %v268 = vsub.s32 0, %v267
        %v269 = vrot.slane %v259, %v268
        %v270 = vmul.f32 %v249, %v265
        %v271 = vmul.f32 %v249, %v269
        %272 = vset.pattern.permute.xlu0 1
        %273 = vperm.xlu0 %272, %v244
        %v274 = vpop.permute.xlu0 %273
        %v276 = vlaneseq
        %v277 = vshrl.u32 %v276, 7
        %v278 = vsub.s32 1, %v277
        %v279 = vrot.slane %v243, %v278
        %v280 = vlaneseq
        %v281 = vshrl.u32 %v280, 7
        %v282 = vsub.s32 5, %v281
        %v283 = vrot.slane %v243, %v282
        %v286 = vlaneseq
        %v287 = vshrl.u32 %v286, 7
        %v288 = vsub.s32 1, %v287
        %v289 = vrot.slane %v279, %v288
        %v290 = vlaneseq
        %v291 = vshrl.u32 %v290, 7
        %v292 = vsub.s32 1, %v291
        %v293 = vrot.slane %v283, %v292
        %v294 = vmul.f32 %v274, %v289
        %v295 = vmul.f32 %v274, %v293
        %v296 = vadd.f32 %v270, %v294
        %v297 = vadd.f32 %v271, %v295
        %298 = vset.pattern.permute.xlu0 2
        %299 = vperm.xlu0 %298, %v244
        %v300 = vpop.permute.xlu0 %299
        %v302 = vlaneseq
        %v303 = vshrl.u32 %v302, 7
        %v304 = vsub.s32 2, %v303
        %v305 = vrot.slane %v243, %v304
        %v306 = vlaneseq
        %v307 = vshrl.u32 %v306, 7
        %v308 = vsub.s32 6, %v307
        %v309 = vrot.slane %v243, %v308
        %v312 = vlaneseq
        %v313 = vshrl.u32 %v312, 7
        %v314 = vsub.s32 2, %v313
        %v315 = vrot.slane %v305, %v314
        %v316 = vlaneseq
        %v317 = vshrl.u32 %v316, 7
        %v318 = vsub.s32 2, %v317
        %v319 = vrot.slane %v309, %v318
        %v320 = vmul.f32 %v300, %v315
        %v321 = vmul.f32 %v300, %v319
        %v322 = vadd.f32 %v296, %v320
        %v323 = vadd.f32 %v297, %v321
        %324 = vset.pattern.permute.xlu0 3
        %325 = vperm.xlu0 %324, %v244
        %v326 = vpop.permute.xlu0 %325
        %v328 = vlaneseq
        %v329 = vshrl.u32 %v328, 7
        %v330 = vsub.s32 3, %v329
        %v331 = vrot.slane %v243, %v330
        %v332 = vlaneseq
        %v333 = vshrl.u32 %v332, 7
        %v334 = vsub.s32 7, %v333
        %v335 = vrot.slane %v243, %v334
        %v338 = vlaneseq
        %v339 = vshrl.u32 %v338, 7
        %v340 = vsub.s32 3, %v339
        %v341 = vrot.slane %v331, %v340
        %v342 = vlaneseq
        %v343 = vshrl.u32 %v342, 7
        %v344 = vsub.s32 3, %v343
        %v345 = vrot.slane %v335, %v344
        %v346 = vmul.f32 %v326, %v341
        %v347 = vmul.f32 %v326, %v345
        %v348 = vadd.f32 %v322, %v346
        %v349 = vadd.f32 %v323, %v347
        %351 = vset.pattern.permute.xlu0 0
        %352 = vperm.xlu0 %351, %v245
        %v353 = vpop.permute.xlu0 %352
        %v355 = vadd.f32 %v348, %v353
        %v356 = vadd.f32 %v349, %v353
        %v357 = vmax.f32 %v355, 0.0
        %v358 = vmax.f32 %v356, 0.0
        %359 = vst [vmem:[%s223] sm:$0xff] %v357
        %360 = vst [vmem:[%s223 + $0x8] sm:$0xff] %v358
        %s361 = sand.u32 %s128, 1
        %s362 = scalar_lea.sflag [#allocation3], %s361
        %s363 = sand.u32 %s128, 1
        %s364 = smul.addr %s363, 16
        %s365 = scalar_lea.vmem [#allocation2], %s364
        // Predicated region
        $region33: #{tpu_custom_call.1} parent=31 // pred_check
          %p366 = pneg %p138
        $region34: #{tpu_custom_call.1} parent=31 // pred_check_branch
          %368 = sbr.rel (%p366) target = $region36
        $region35: #{tpu_custom_call.1} parent=31 // pred_region
          %s369 = smul.u32 2, %s24
          %s371 = ssub.s32 256, 256
          %372 = vsyncadd %s362, %s371
          %s373 = smul.addr %s23, 2
          %s374 = sadd.s32 %s369, %s373
          %s375 = smul.addr %s22, 2
          %s376 = sadd.s32 %s374, %s375
          %s377 = smul.addr %s376, 128
          %s378 = scalar_lea.hbm %s3, %s377
          %s380 = sshll.u32 %s365, 4
          %s381 = int_to_ptr.vmem [resolvable:$true] %s380
          %383 = dma.vmem_to_hbm [thread:$0]  %s381, 256, %s378, %s362
        $region36: #{tpu_custom_call.1} parent=31 // pred_fallthru
          _
      $region32: #{tpu_custom_call.1} parent=5 // pred_fallthru
        _
      %p384 = scmp.le.s32.totalorder 2, %s12
      // Predicated region
      $region37: #{tpu_custom_call.1} parent=5 // pred_check
        %p385 = pneg %p384
      $region38: #{tpu_custom_call.1} parent=5 // pred_check_branch
        %387 = sbr.rel (%p385) target = $region40
      $region39: #{tpu_custom_call.1} parent=5 // pred_region
        %s388 = ssub.s32 %s12, 2
        // Predicated region
        $region41: #{tpu_custom_call.1} parent=39 // pred_check
          %p389 = pneg %p144
        $region42: #{tpu_custom_call.1} parent=39 // pred_check_branch
          %391 = sbr.rel (%p389) target = $region44
        $region43: #{tpu_custom_call.1} parent=39 // pred_region
          %s392 = sand.u32 %s129, 1
          %s393 = scalar_lea.sflag [#allocation3], %s392
          %s394 = sand.u32 %s129, 1
          %s395 = smul.addr %s394, 16
          %s396 = scalar_lea.vmem [#allocation2], %s395
          %397 = dma.done %s393, 256
        $region44: #{tpu_custom_call.1} parent=39 // pred_fallthru
          _
      $region40: #{tpu_custom_call.1} parent=5 // pred_fallthru
        _
    $region6: #{tpu_custom_call.1} parent=1 // loop_footer
      %s16 = sadd.s32 1, %s12
    $region7: #{tpu_custom_call.1} parent=1 // loop_footer_branch
      %11 = sbr.rel target = $region3
    $region8: #{tpu_custom_call.1} parent=1 // loop_exit
      _
    %398 = vsyncpa [#allocation3], 1
    %s399 = scalar_lea.sflag [#allocation3], 1
    %400 = vsyncpa %s399, 1

</llo_original>
